<compile_context>
chip_gen: v5e
topology: v5e:2x2
jax: 0.10.0
libtpu: 0.0.40
codegen_flags: <defaults>
</compile_context>

<pallas_src>
import functools

import jax
import jax.numpy as jnp
from jax import lax
from jax.experimental import pallas as pl
from jax.experimental.pallas import tpu as pltpu


def _mlp_kernel(x_ref, w1_ref, b1_ref, w2_ref, b2_ref, w3r_ref, b3_ref, o_ref):
    """Fused 3-layer MLP on one (TB, n0) batch tile.

    x_ref:  (TB, n0)  f32   (cast to bf16 in-kernel; VPU has slack)
    w1_ref: (n0, n1)  bf16   b1_ref: (1, n1) f32
    w2_ref: (n1, n2)  bf16   b2_ref: (1, n2) f32
    w3r_ref:(1,  n2)  bf16   b3_ref: (1, 1)  f32   (w3 stored as a row)
    o_ref:  (1, 1, TB) f32   (lane-dense output block)
    """
    # Cast the streamed x tile to bf16 for the MXU; accumulate in f32.
    x_bf = x_ref[...].astype(jnp.bfloat16)                        # (TB, n0)

    # Layer 1.
    h1 = jnp.dot(x_bf, w1_ref[...], preferred_element_type=jnp.float32)
    h1 = jnp.maximum(h1 + b1_ref[...], 0.0)                       # (TB, n1) f32

    # Layer 2.
    h2 = jnp.dot(h1.astype(jnp.bfloat16), w2_ref[...],
                 preferred_element_type=jnp.float32)
    h2 = jnp.maximum(h2 + b2_ref[...], 0.0)                       # (TB, n2) f32

    # Layer 3 as a contraction over n2 (no explicit f32 transpose):
    #   (1, n2) . (TB, n2) -> (1, TB)
    out = lax.dot_general(
        w3r_ref[...], h2.astype(jnp.bfloat16),
        dimension_numbers=(((1,), (1,)), ((), ())),
        preferred_element_type=jnp.float32)
    o_ref[...] = ((out + b3_ref[...]).astype(o_ref.dtype))[None]  # (1, 1, TB)


def _round_up(a: int, b: int) -> int:
    return (a + b - 1) // b * b


def _choose_batch_tile(B: int, n0: int, block_b: int):
    """Pick the batch tile size (multiple of 8) and the grid length.

    The double-buffered f32 x tile is kept around ~32 MiB, and the tile count
    is nudged to an even number >= 2 so both TensorCores on v7x get work.
    """
    per_buf_budget = 16 * 1024 * 1024                  # bytes per x buffer (f32)
    cap = max(8, (per_buf_budget // max(1, n0 * 4)) // 8 * 8)
    tb = max(8, min(block_b, cap, _round_up(B, 8)) // 8 * 8)
    num_tiles = -(-B // tb)
    if B > 8:
        if num_tiles == 1:
            tb = _round_up(-(-B // 2), 8)              # split across both TCs
        elif num_tiles % 2 == 1:
            tb = _round_up(-(-B // (num_tiles + 1)), 8)
        num_tiles = -(-B // tb)
    return tb, num_tiles


@functools.partial(jax.jit, static_argnames=("block_b",))
def perceptron_forward(x_nchw, params, *, block_b: int = 4096):
    """JAX wrapper reproducing Perceptron.forward semantics.

    Args:
      x_nchw: (B, C, H, W) float32 input (PyTorch NCHW layout).
      params: dict with w1 (n0,n1), b1 (1,n1), w2 (n1,n2), b2 (1,n2),
              w3 (n2,1), b3 (1,1).
      block_b: upper bound on the batch tile size (rows per grid step).
    Returns:
      (B,) float32 logits (matching torch.squeeze(out.T); 0-d if B == 1).
    """
    B = x_nchw.shape[0]
    x_flat = x_nchw.reshape(B, -1)                 # Flatten (row-major, == torch)
    n0 = x_flat.shape[1]
    n1 = params["w1"].shape[1]
    n2 = params["w2"].shape[1]

    # x is streamed in its native f32 (no extra HBM convert/pad passes);
    # the weights (tiny) are cast to bf16 once at the call boundary. Biases
    # stay f32 so bias+ReLU is f32 VPU work on every generation (v5e has no
    # bf16 VPU path). All matmuls accumulate in f32.
    w1 = params["w1"].astype(jnp.bfloat16)
    w2 = params["w2"].astype(jnp.bfloat16)
    w3_row = params["w3"].reshape(1, n2).astype(jnp.bfloat16)   # (1, n2)
    b1 = params["b1"].astype(jnp.float32)
    b2 = params["b2"].astype(jnp.float32)
    b3 = params["b3"].astype(jnp.float32)

    tb, num_tiles = _choose_batch_tile(B, n0, block_b)

    flops = 2 * num_tiles * tb * (n0 * n1 + n1 * n2 + n2)
    bytes_accessed = (
        B * n0 * 4                                   # x (f32, read once)
        + (n0 * n1 + n1 * n2 + n2) * 2               # weights (bf16)
        + (n1 + n2 + 1) * 4                          # biases (f32)
        + num_tiles * tb * 4                         # output (f32)
    )

    # VMEM budget derived from the actual tile footprint, capped for v7x
    # (64 MiB physical VMEM); v5e/v6e have 128 MiB so this is always safe.
    vmem_need = (
        2 * tb * n0 * 4                              # x double buffer (f32)
        + 2 * (n0 * n1 + n1 * n2 + n2) * 2           # weights (allow 2 copies)
        + 2 * (n1 + n2 + 1) * 4                      # biases
        + 2 * 2 * tb * 4                             # output double buffer
        + 2 * tb * (n1 + n2) * 4                     # f32 intermediates
        + (4 << 20)                                  # headroom
    )
    vmem_limit = int(min(48 << 20, max(32 << 20, vmem_need)))

    out = pl.pallas_call(
        _mlp_kernel,
        out_shape=jax.ShapeDtypeStruct((num_tiles, 1, tb), jnp.float32),
        grid=(num_tiles,),
        in_specs=[
            pl.BlockSpec((tb, n0), lambda i: (i, 0)),    # x: streamed per tile
            pl.BlockSpec((n0, n1), lambda i: (0, 0)),    # w1: VMEM-resident
            pl.BlockSpec((1, n1), lambda i: (0, 0)),     # b1
            pl.BlockSpec((n1, n2), lambda i: (0, 0)),    # w2
            pl.BlockSpec((1, n2), lambda i: (0, 0)),     # b2
            pl.BlockSpec((1, n2), lambda i: (0, 0)),     # w3 (as a row)
            pl.BlockSpec((1, 1), lambda i: (0, 0)),      # b3
        ],
        out_specs=pl.BlockSpec((1, 1, tb), lambda i: (i, 0, 0)),
        compiler_params=pltpu.CompilerParams(
            dimension_semantics=("parallel",),
            vmem_limit_bytes=vmem_limit,
        ),
        cost_estimate=pl.CostEstimate(
            flops=flops, transcendentals=0, bytes_accessed=bytes_accessed),
    )(x_flat, w1, b1, w2, b2, w3_row, b3)

    # Ragged last tile: garbage rows (if any) are sliced off here; the kernel
    # performs no reductions over the batch axis, so valid rows are exact.
    logits = out.reshape(-1)[:B]
    # torch.squeeze(percep(x).T): (B,) for B > 1, scalar for B == 1.
    return jnp.squeeze(logits)


def init_params(key, n_layers):
    """Deterministic init mimicking torch.nn.Linear default U[-1/sqrt(fan_in), +]."""
    n0, n1, n2 = n_layers
    ks = jax.random.split(key, 6)

    def lin(kw, kb, fan_in, fan_out):
        bound = 1.0 / jnp.sqrt(jnp.float32(fan_in))
        w = jax.random.uniform(kw, (fan_in, fan_out), jnp.float32, -bound, bound)
        b = jax.random.uniform(kb, (1, fan_out), jnp.float32, -bound, bound)
        return w, b

    w1, b1 = lin(ks[0], ks[1], n0, n1)
    w2, b2 = lin(ks[2], ks[3], n1, n2)
    w3, b3 = lin(ks[4], ks[5], n2, 1)
    return {"w1": w1, "b1": b1, "w2": w2, "b2": b2, "w3": w3, "b3": b3}


if __name__ == "__main__":
    key = jax.random.PRNGKey(0)
    k_x, k_p = jax.random.split(key)

    # Small shapes consistent with a 4-D input: (B=2, C=4, H=16, W=16) -> n0=1024
    B, C, H, W = 2, 4, 16, 16
    n0 = C * H * W
    n1, n2 = 32, 16

    x = jax.random.normal(k_x, (B, C, H, W), jnp.float32)
    params = init_params(k_p, (n0, n1, n2))

    y = perceptron_forward(x, params)
    y = jax.block_until_ready(y)
    assert y.shape == (B,), y.shape

    # Reference 1: same bf16-operand / f32-accumulation path as the kernel.
    x_flat = x.reshape(B, -1)
    xb = x_flat.astype(jnp.bfloat16)
    w1b = params["w1"].astype(jnp.bfloat16)
    w2b = params["w2"].astype(jnp.bfloat16)
    w3b = params["w3"].astype(jnp.bfloat16)
    h1 = jnp.maximum(
        jnp.dot(xb, w1b, preferred_element_type=jnp.float32) + params["b1"], 0.0)
    h2 = jnp.maximum(
        jnp.dot(h1.astype(jnp.bfloat16), w2b,
                preferred_element_type=jnp.float32) + params["b2"], 0.0)
    ref_bf = jnp.squeeze(
        (jnp.dot(h2.astype(jnp.bfloat16), w3b,
                 preferred_element_type=jnp.float32) + params["b3"]).T)
    assert jnp.allclose(y, ref_bf, atol=1e-3, rtol=1e-2), (y, ref_bf)

    # Reference 2: full-f32 torch semantics (loose tolerance due to bf16 MXU operands).
    h1f = jnp.maximum(x_flat @ params["w1"] + params["b1"], 0.0)
    h2f = jnp.maximum(h1f @ params["w2"] + params["b2"], 0.0)
    ref_f32 = jnp.squeeze((h2f @ params["w3"] + params["b3"]).T)
    assert jnp.allclose(y, ref_f32, atol=5e-2, rtol=5e-2), (y, ref_f32)

    print("KERNEL_OK")
</pallas_src>

<mosaic_0001>
module attributes {stable_mosaic.version = 11 : i64} {
  func.func @_mlp_kernel(%arg0: i32, %arg1: memref<8x1024xf32, #tpu.memory_space<vmem>>, %arg2: memref<1024x32xbf16, #tpu.memory_space<vmem>>, %arg3: memref<1x32xf32, #tpu.memory_space<vmem>>, %arg4: memref<32x16xbf16, #tpu.memory_space<vmem>>, %arg5: memref<1x16xf32, #tpu.memory_space<vmem>>, %arg6: memref<1x16xbf16, #tpu.memory_space<vmem>>, %arg7: memref<1x1xf32, #tpu.memory_space<vmem>>, %arg8: memref<1x1x8xf32, #tpu.memory_space<vmem>>) attributes {dimension_semantics = [#tpu.dimension_semantics<parallel>], iteration_bounds = array<i64: 1>, scalar_prefetch = 0 : i64, scratch_operands = 0 : i64, tpu.core_type = #tpu.core_type<tc>, window_params = [{transform_indices = @transform_0, window_bounds = array<i64: 8, 1024>}, {pipeline_mode = #tpu.pipeline_mode<synchronous>, transform_indices = @transform_1, window_bounds = array<i64: 1024, 32>}, {pipeline_mode = #tpu.pipeline_mode<synchronous>, transform_indices = @transform_2, window_bounds = array<i64: 1, 32>}, {pipeline_mode = #tpu.pipeline_mode<synchronous>, transform_indices = @transform_3, window_bounds = array<i64: 32, 16>}, {pipeline_mode = #tpu.pipeline_mode<synchronous>, transform_indices = @transform_4, window_bounds = array<i64: 1, 16>}, {pipeline_mode = #tpu.pipeline_mode<synchronous>, transform_indices = @transform_5, window_bounds = array<i64: 1, 16>}, {pipeline_mode = #tpu.pipeline_mode<synchronous>, transform_indices = @transform_6, window_bounds = array<i64: 1, 1>}, {transform_indices = @transform_7, window_bounds = array<i64: 1, 1, 8>}]} {
    %c0 = arith.constant 0 : index
    %c0_0 = arith.constant 0 : index
    %0 = vector.load %arg1[%c0, %c0_0] : memref<8x1024xf32, #tpu.memory_space<vmem>>, vector<8x1024xf32>
    %1 = arith.truncf %0 : vector<8x1024xf32> to vector<8x1024xbf16>
    %c0_1 = arith.constant 0 : index
    %c0_2 = arith.constant 0 : index
    %2 = vector.load %arg2[%c0_1, %c0_2] : memref<1024x32xbf16, #tpu.memory_space<vmem>>, vector<1024x32xbf16>
    %cst = arith.constant dense<0.000000e+00> : vector<8x32xf32>
    %3 = tpu.matmul %1, %2, %cst {dimension_numbers = #tpu.dot_dimension_numbers<[1], [0], [0], [1], [0, 0, 1, 1], [], []>} : vector<8x1024xbf16>, vector<1024x32xbf16>, vector<8x32xf32> -> vector<8x32xf32>
    %c0_3 = arith.constant 0 : index
    %c0_4 = arith.constant 0 : index
    %4 = vector.load %arg3[%c0_3, %c0_4] : memref<1x32xf32, #tpu.memory_space<vmem>>, vector<1x32xf32>
    %5 = vector.broadcast %4 : vector<1x32xf32> to vector<8x32xf32>
    %6 = arith.addf %3, %5 : vector<8x32xf32>
    %cst_5 = arith.constant 0.000000e+00 : f32
    %7 = vector.broadcast %cst_5 : f32 to vector<8x32xf32>
    %8 = arith.maximumf %6, %7 : vector<8x32xf32>
    %9 = arith.truncf %8 : vector<8x32xf32> to vector<8x32xbf16>
    %c0_6 = arith.constant 0 : index
    %c0_7 = arith.constant 0 : index
    %10 = vector.load %arg4[%c0_6, %c0_7] : memref<32x16xbf16, #tpu.memory_space<vmem>>, vector<32x16xbf16>
    %cst_8 = arith.constant dense<0.000000e+00> : vector<8x16xf32>
    %11 = tpu.matmul %9, %10, %cst_8 {dimension_numbers = #tpu.dot_dimension_numbers<[1], [0], [0], [1], [0, 0, 1, 1], [], []>} : vector<8x32xbf16>, vector<32x16xbf16>, vector<8x16xf32> -> vector<8x16xf32>
    %c0_9 = arith.constant 0 : index
    %c0_10 = arith.constant 0 : index
    %12 = vector.load %arg5[%c0_9, %c0_10] : memref<1x16xf32, #tpu.memory_space<vmem>>, vector<1x16xf32>
    %13 = vector.broadcast %12 : vector<1x16xf32> to vector<8x16xf32>
    %14 = arith.addf %11, %13 : vector<8x16xf32>
    %cst_11 = arith.constant 0.000000e+00 : f32
    %15 = vector.broadcast %cst_11 : f32 to vector<8x16xf32>
    %16 = arith.maximumf %14, %15 : vector<8x16xf32>
    %c0_12 = arith.constant 0 : index
    %c0_13 = arith.constant 0 : index
    %17 = vector.load %arg6[%c0_12, %c0_13] : memref<1x16xbf16, #tpu.memory_space<vmem>>, vector<1x16xbf16>
    %18 = arith.truncf %16 : vector<8x16xf32> to vector<8x16xbf16>
    %cst_14 = arith.constant dense<0.000000e+00> : vector<1x8xf32>
    %19 = tpu.matmul %17, %18, %cst_14 {dimension_numbers = #tpu.dot_dimension_numbers<[1], [1], [0], [0], [0, 0, 1, 0], [], []>} : vector<1x16xbf16>, vector<8x16xbf16>, vector<1x8xf32> -> vector<1x8xf32>
    %c0_15 = arith.constant 0 : index
    %c0_16 = arith.constant 0 : index
    %20 = vector.load %arg7[%c0_15, %c0_16] : memref<1x1xf32, #tpu.memory_space<vmem>>, vector<1x1xf32>
    %21 = vector.broadcast %20 : vector<1x1xf32> to vector<1x8xf32>
    %22 = arith.addf %19, %21 : vector<1x8xf32>
    %23 = vector.shape_cast %22 : vector<1x8xf32> to vector<1x1x8xf32>
    %c0_17 = arith.constant 0 : index
    %c0_18 = arith.constant 0 : index
    %c0_19 = arith.constant 0 : index
    %24 = vector.load %arg8[%c0_17, %c0_18, %c0_19] : memref<1x1x8xf32, #tpu.memory_space<vmem>>, vector<1x1x8xf32>
    tpu.vector_store %arg8[%c0_17, %c0_18, %c0_19], %23 {strides = array<i32>} : memref<1x1x8xf32, #tpu.memory_space<vmem>>, vector<1x1x8xf32>,
    return
  }
  func.func @transform_0(%arg0: i32) -> (i32, i32) {
    %c0_i32 = arith.constant 0 : i32
    %c0_i32_0 = arith.constant 0 : i32
    return %arg0, %c0_i32 : i32, i32
  }
  func.func @transform_1(%arg0: i32) -> (i32, i32) {
    %c0_i32 = arith.constant 0 : i32
    %c0_i32_0 = arith.constant 0 : i32
    %c0_i32_1 = arith.constant 0 : i32
    return %c0_i32, %c0_i32_0 : i32, i32
  }
  func.func @transform_2(%arg0: i32) -> (i32, i32) {
    %c0_i32 = arith.constant 0 : i32
    %c0_i32_0 = arith.constant 0 : i32
    %c0_i32_1 = arith.constant 0 : i32
    return %c0_i32, %c0_i32_0 : i32, i32
  }
  func.func @transform_3(%arg0: i32) -> (i32, i32) {
    %c0_i32 = arith.constant 0 : i32
    %c0_i32_0 = arith.constant 0 : i32
    %c0_i32_1 = arith.constant 0 : i32
    return %c0_i32, %c0_i32_0 : i32, i32
  }
  func.func @transform_4(%arg0: i32) -> (i32, i32) {
    %c0_i32 = arith.constant 0 : i32
    %c0_i32_0 = arith.constant 0 : i32
    %c0_i32_1 = arith.constant 0 : i32
    return %c0_i32, %c0_i32_0 : i32, i32
  }
  func.func @transform_5(%arg0: i32) -> (i32, i32) {
    %c0_i32 = arith.constant 0 : i32
    %c0_i32_0 = arith.constant 0 : i32
    %c0_i32_1 = arith.constant 0 : i32
    return %c0_i32, %c0_i32_0 : i32, i32
  }
  func.func @transform_6(%arg0: i32) -> (i32, i32) {
    %c0_i32 = arith.constant 0 : i32
    %c0_i32_0 = arith.constant 0 : i32
    %c0_i32_1 = arith.constant 0 : i32
    return %c0_i32, %c0_i32_0 : i32, i32
  }
  func.func @transform_7(%arg0: i32) -> (i32, i32, i32) {
    %c0_i32 = arith.constant 0 : i32
    %c0_i32_0 = arith.constant 0 : i32
    %c0_i32_1 = arith.constant 0 : i32
    return %arg0, %c0_i32, %c0_i32_0 : i32, i32, i32
  }
}

</mosaic_0001>

<llo_original>
// kernel: perceptron_forward.1
$region0: #{perceptron_forward.1}
  #allocation0 [shape = 'u32[]', space=smem, size = 0x4, offset = 0x4, fixed_abs, tag = 'smem constant byte address 0x4 - core index']
  #allocation1 [shape = 'u32[72,128]{1,0:T(1,128)}', space=vmem, size = 0x9000, scoped, tag = 'internal scratch']
  #allocation2 [shape = 'f32[1,1]{1,0:T(1,128)S(1)}', space=vmem, size = 0x200, scoped, tag = 'scoped memory for perceptron_forward.1']
  %s0 = inlined_call_operand.vmem [shape: f32[2,1024], index: 0, kind: input, shape index: {}]
  %s1 = inlined_call_operand.vmem [shape: bf16[1024,32], index: 1, kind: input, shape index: {}]
  %s2 = inlined_call_operand.vmem [shape: f32[1,32], index: 2, kind: input, shape index: {}]
  %s3 = inlined_call_operand.vmem [shape: bf16[32,16], index: 3, kind: input, shape index: {}]
  %s4 = inlined_call_operand.vmem [shape: f32[1,16], index: 4, kind: input, shape index: {}]
  %s5 = inlined_call_operand.vmem [shape: bf16[1,16], index: 5, kind: input, shape index: {}]
  %s6 = inlined_call_operand.<no memory space> [shape: f32[1,1], index: 6, kind: input, shape index: {}]
  %s7 = inlined_call_operand.vmem [shape: f32[1,1,8], index: 7, kind: output, shape index: {}]
  %s8 = sld [smem:[#allocation0]]
  $region38: #{perceptron_forward.1} parent=0
    _
  %s10 = ssub.s32 1, %s8
  %s11 = scalar_select 0, %s10, %s8
  %v12 = vstv %s6
  %13 = vst [vmem:[#allocation2] sm:$0x1] %v12
  // Predicated region
  $region2: #{perceptron_forward.1} parent=0 // pred_check
    _
  $region3: #{perceptron_forward.1} parent=0 // pred_check_branch
    %15 = sbr.rel (0) target = $region5
  $region4: #{perceptron_forward.1} parent=0 // pred_region
    _
  $region5: #{perceptron_forward.1} parent=0 // pred_fallthru
    _
  // Predicated region
  $region6: #{perceptron_forward.1} parent=0 // pred_check
    _
  $region7: #{perceptron_forward.1} parent=0 // pred_check_branch
    %17 = sbr.rel (0) target = $region9
  $region8: #{perceptron_forward.1} parent=0 // pred_region
    _
  $region9: #{perceptron_forward.1} parent=0 // pred_fallthru
    _
  // Predicated region
  $region10: #{perceptron_forward.1} parent=0 // pred_check
    _
  $region11: #{perceptron_forward.1} parent=0 // pred_check_branch
    %19 = sbr.rel (0) target = $region13
  $region12: #{perceptron_forward.1} parent=0 // pred_region
    _
  $region13: #{perceptron_forward.1} parent=0 // pred_fallthru
    _
  // Predicated region
  $region14: #{perceptron_forward.1} parent=0 // pred_check
    _
  $region15: #{perceptron_forward.1} parent=0 // pred_check_branch
    %21 = sbr.rel (0) target = $region17
  $region16: #{perceptron_forward.1} parent=0 // pred_region
    _
  $region17: #{perceptron_forward.1} parent=0 // pred_fallthru
    _
  // Predicated region
  $region18: #{perceptron_forward.1} parent=0 // pred_check
    _
  $region19: #{perceptron_forward.1} parent=0 // pred_check_branch
    %23 = sbr.rel (0) target = $region21
  $region20: #{perceptron_forward.1} parent=0 // pred_region
    _
  $region21: #{perceptron_forward.1} parent=0 // pred_fallthru
    _
  // Predicated region
  $region22: #{perceptron_forward.1} parent=0 // pred_check
    _
  $region23: #{perceptron_forward.1} parent=0 // pred_check_branch
    %25 = sbr.rel (0) target = $region25
  $region24: #{perceptron_forward.1} parent=0 // pred_region
    _
  $region25: #{perceptron_forward.1} parent=0 // pred_fallthru
    _
  // Predicated region
  $region26: #{perceptron_forward.1} parent=0 // pred_check
    _
  $region27: #{perceptron_forward.1} parent=0 // pred_check_branch
    %27 = sbr.rel (0) target = $region29
  $region28: #{perceptron_forward.1} parent=0 // pred_region
    _
  $region29: #{perceptron_forward.1} parent=0 // pred_fallthru
    _
  %v29 = vld [vmem:[%s0] sm:$0xff]
  %v30 = vld [vmem:[%s0 + $0x8] sm:$0xff]
  %v31 = vld [vmem:[%s0 + $0x10] sm:$0xff]
  %v32 = vld [vmem:[%s0 + $0x18] sm:$0xff]
  %v33 = vld [vmem:[%s0 + $0x20] sm:$0xff]
  %v34 = vld [vmem:[%s0 + $0x28] sm:$0xff]
  %v35 = vld [vmem:[%s0 + $0x30] sm:$0xff]
  %v36 = vld [vmem:[%s0 + $0x38] sm:$0xff]
  %45 = vst [vmem:[#allocation1] ss:$4 sm:$0xff] %v29
  %s46 = scalar_lea.vmem [#allocation1], 1
  %47 = vst [vmem:[%s46] ss:$4 sm:$0xff] %v31
  %s48 = scalar_lea.vmem [#allocation1], 2
  %49 = vst [vmem:[%s48] ss:$4 sm:$0xff] %v33
  %s50 = scalar_lea.vmem [#allocation1], 3
  %51 = vst [vmem:[%s50] ss:$4 sm:$0xff] %v35
  %s52 = scalar_lea.vmem [#allocation1], 32
  %53 = vst [vmem:[%s52] ss:$4 sm:$0xff] %v30
  %s54 = scalar_lea.vmem [#allocation1], 33
  %55 = vst [vmem:[%s54] ss:$4 sm:$0xff] %v32
  %s56 = scalar_lea.vmem [#allocation1], 34
  %57 = vst [vmem:[%s56] ss:$4 sm:$0xff] %v34
  %s58 = scalar_lea.vmem [#allocation1], 35
  %59 = vst [vmem:[%s58] ss:$4 sm:$0xff] %v36
  %v60 = vld.sshfl [vmem:[#allocation1] sm:$0xff pattern:$0x73625140]
  %v61 = vld.sshfl [vmem:[#allocation1 + $0x8] sm:$0xff pattern:$0x73625140]
  %v62 = vld.sshfl [vmem:[#allocation1 + $0x10] sm:$0xff pattern:$0x73625140]
  %v63 = vld.sshfl [vmem:[#allocation1 + $0x18] sm:$0xff pattern:$0x73625140]
  %v64 = vld.sshfl [vmem:[#allocation1 + $0x20] sm:$0xff pattern:$0x73625140]
  %v65 = vld.sshfl [vmem:[#allocation1 + $0x28] sm:$0xff pattern:$0x73625140]
  %v66 = vld.sshfl [vmem:[#allocation1 + $0x30] sm:$0xff pattern:$0x73625140]
  %v67 = vld.sshfl [vmem:[#allocation1 + $0x38] sm:$0xff pattern:$0x73625140]
  %v76 = vpack.c.bf16 %v60, %v60
  %v77 = vpack.c.bf16 %v61, %v61
  %v78 = vpack.c.bf16 %v62, %v62
  %v79 = vpack.c.bf16 %v63, %v63
  %v80 = vpack.c.bf16 %v64, %v64
  %v81 = vpack.c.bf16 %v65, %v65
  %v82 = vpack.c.bf16 %v66, %v66
  %v83 = vpack.c.bf16 %v67, %v67
  %v84 = vld [vmem:[%s1] sm:$0xf]
  %v85 = vld [vmem:[%s1 + $0x4] sm:$0xf]
  %v86 = vld [vmem:[%s1 + $0x8] sm:$0xf]
  %v87 = vld [vmem:[%s1 + $0xc] sm:$0xf]
  %v88 = vld [vmem:[%s1 + $0x10] sm:$0xf]
  %v89 = vld [vmem:[%s1 + $0x14] sm:$0xf]
  %v90 = vld [vmem:[%s1 + $0x18] sm:$0xf]
  %v91 = vld [vmem:[%s1 + $0x1c] sm:$0xf]
  %v92 = vld [vmem:[%s1 + $0x20] sm:$0xf]
  %v93 = vld [vmem:[%s1 + $0x24] sm:$0xf]
  %v94 = vld [vmem:[%s1 + $0x28] sm:$0xf]
  %v95 = vld [vmem:[%s1 + $0x2c] sm:$0xf]
  %v96 = vld [vmem:[%s1 + $0x30] sm:$0xf]
  %v97 = vld [vmem:[%s1 + $0x34] sm:$0xf]
  %v98 = vld [vmem:[%s1 + $0x38] sm:$0xf]
  %v99 = vld [vmem:[%s1 + $0x3c] sm:$0xf]
  %v100 = vld [vmem:[%s1 + $0x40] sm:$0xf]
  %v101 = vld [vmem:[%s1 + $0x44] sm:$0xf]
  %v102 = vld [vmem:[%s1 + $0x48] sm:$0xf]
  %v103 = vld [vmem:[%s1 + $0x4c] sm:$0xf]
  %v104 = vld [vmem:[%s1 + $0x50] sm:$0xf]
  %v105 = vld [vmem:[%s1 + $0x54] sm:$0xf]
  %v106 = vld [vmem:[%s1 + $0x58] sm:$0xf]
  %v107 = vld [vmem:[%s1 + $0x5c] sm:$0xf]
  %v108 = vld [vmem:[%s1 + $0x60] sm:$0xf]
  %v109 = vld [vmem:[%s1 + $0x64] sm:$0xf]
  %v110 = vld [vmem:[%s1 + $0x68] sm:$0xf]
  %v111 = vld [vmem:[%s1 + $0x6c] sm:$0xf]
  %v112 = vld [vmem:[%s1 + $0x70] sm:$0xf]
  %v113 = vld [vmem:[%s1 + $0x74] sm:$0xf]
  %v114 = vld [vmem:[%s1 + $0x78] sm:$0xf]
  %v115 = vld [vmem:[%s1 + $0x7c] sm:$0xf]
  %v116 = vld [vmem:[%s1 + $0x80] sm:$0xf]
  %v117 = vld [vmem:[%s1 + $0x84] sm:$0xf]
  %v118 = vld [vmem:[%s1 + $0x88] sm:$0xf]
  %v119 = vld [vmem:[%s1 + $0x8c] sm:$0xf]
  %v120 = vld [vmem:[%s1 + $0x90] sm:$0xf]
  %v121 = vld [vmem:[%s1 + $0x94] sm:$0xf]
  %v122 = vld [vmem:[%s1 + $0x98] sm:$0xf]
  %v123 = vld [vmem:[%s1 + $0x9c] sm:$0xf]
  %v124 = vld [vmem:[%s1 + $0xa0] sm:$0xf]
  %v125 = vld [vmem:[%s1 + $0xa4] sm:$0xf]
  %v126 = vld [vmem:[%s1 + $0xa8] sm:$0xf]
  %v127 = vld [vmem:[%s1 + $0xac] sm:$0xf]
  %v128 = vld [vmem:[%s1 + $0xb0] sm:$0xf]
  %v129 = vld [vmem:[%s1 + $0xb4] sm:$0xf]
  %v130 = vld [vmem:[%s1 + $0xb8] sm:$0xf]
  %v131 = vld [vmem:[%s1 + $0xbc] sm:$0xf]
  %v132 = vld [vmem:[%s1 + $0xc0] sm:$0xf]
  %v133 = vld [vmem:[%s1 + $0xc4] sm:$0xf]
  %v134 = vld [vmem:[%s1 + $0xc8] sm:$0xf]
  %v135 = vld [vmem:[%s1 + $0xcc] sm:$0xf]
  %v136 = vld [vmem:[%s1 + $0xd0] sm:$0xf]
  %v137 = vld [vmem:[%s1 + $0xd4] sm:$0xf]
  %v138 = vld [vmem:[%s1 + $0xd8] sm:$0xf]
  %v139 = vld [vmem:[%s1 + $0xdc] sm:$0xf]
  %v140 = vld [vmem:[%s1 + $0xe0] sm:$0xf]
  %v141 = vld [vmem:[%s1 + $0xe4] sm:$0xf]
  %v142 = vld [vmem:[%s1 + $0xe8] sm:$0xf]
  %v143 = vld [vmem:[%s1 + $0xec] sm:$0xf]
  %v144 = vld [vmem:[%s1 + $0xf0] sm:$0xf]
  %v145 = vld [vmem:[%s1 + $0xf4] sm:$0xf]
  %v146 = vld [vmem:[%s1 + $0xf8] sm:$0xf]
  %v147 = vld [vmem:[%s1 + $0xfc] sm:$0xf]
  %v148 = vld [vmem:[%s1 + $0x100] sm:$0xf]
  %v149 = vld [vmem:[%s1 + $0x104] sm:$0xf]
  %v150 = vld [vmem:[%s1 + $0x108] sm:$0xf]
  %v151 = vld [vmem:[%s1 + $0x10c] sm:$0xf]
  %v152 = vld [vmem:[%s1 + $0x110] sm:$0xf]
  %v153 = vld [vmem:[%s1 + $0x114] sm:$0xf]
  %v154 = vld [vmem:[%s1 + $0x118] sm:$0xf]
  %v155 = vld [vmem:[%s1 + $0x11c] sm:$0xf]
  %v156 = vld [vmem:[%s1 + $0x120] sm:$0xf]
  %v157 = vld [vmem:[%s1 + $0x124] sm:$0xf]
  %v158 = vld [vmem:[%s1 + $0x128] sm:$0xf]
  %v159 = vld [vmem:[%s1 + $0x12c] sm:$0xf]
  %v160 = vld [vmem:[%s1 + $0x130] sm:$0xf]
  %v161 = vld [vmem:[%s1 + $0x134] sm:$0xf]
  %v162 = vld [vmem:[%s1 + $0x138] sm:$0xf]
  %v163 = vld [vmem:[%s1 + $0x13c] sm:$0xf]
  %v164 = vld [vmem:[%s1 + $0x140] sm:$0xf]
  %v165 = vld [vmem:[%s1 + $0x144] sm:$0xf]
  %v166 = vld [vmem:[%s1 + $0x148] sm:$0xf]
  %v167 = vld [vmem:[%s1 + $0x14c] sm:$0xf]
  %v168 = vld [vmem:[%s1 + $0x150] sm:$0xf]
  %v169 = vld [vmem:[%s1 + $0x154] sm:$0xf]
  %v170 = vld [vmem:[%s1 + $0x158] sm:$0xf]
  %v171 = vld [vmem:[%s1 + $0x15c] sm:$0xf]
  %v172 = vld [vmem:[%s1 + $0x160] sm:$0xf]
  %v173 = vld [vmem:[%s1 + $0x164] sm:$0xf]
  %v174 = vld [vmem:[%s1 + $0x168] sm:$0xf]
  %v175 = vld [vmem:[%s1 + $0x16c] sm:$0xf]
  %v176 = vld [vmem:[%s1 + $0x170] sm:$0xf]
  %v177 = vld [vmem:[%s1 + $0x174] sm:$0xf]
  %v178 = vld [vmem:[%s1 + $0x178] sm:$0xf]
  %v179 = vld [vmem:[%s1 + $0x17c] sm:$0xf]
  %v180 = vld [vmem:[%s1 + $0x180] sm:$0xf]
  %v181 = vld [vmem:[%s1 + $0x184] sm:$0xf]
  %v182 = vld [vmem:[%s1 + $0x188] sm:$0xf]
  %v183 = vld [vmem:[%s1 + $0x18c] sm:$0xf]
  %v184 = vld [vmem:[%s1 + $0x190] sm:$0xf]
  %v185 = vld [vmem:[%s1 + $0x194] sm:$0xf]
  %v186 = vld [vmem:[%s1 + $0x198] sm:$0xf]
  %v187 = vld [vmem:[%s1 + $0x19c] sm:$0xf]
  %v188 = vld [vmem:[%s1 + $0x1a0] sm:$0xf]
  %v189 = vld [vmem:[%s1 + $0x1a4] sm:$0xf]
  %v190 = vld [vmem:[%s1 + $0x1a8] sm:$0xf]
  %v191 = vld [vmem:[%s1 + $0x1ac] sm:$0xf]
  %v192 = vld [vmem:[%s1 + $0x1b0] sm:$0xf]
  %v193 = vld [vmem:[%s1 + $0x1b4] sm:$0xf]
  %v194 = vld [vmem:[%s1 + $0x1b8] sm:$0xf]
  %v195 = vld [vmem:[%s1 + $0x1bc] sm:$0xf]
  %v196 = vld [vmem:[%s1 + $0x1c0] sm:$0xf]
  %v197 = vld [vmem:[%s1 + $0x1c4] sm:$0xf]
  %v198 = vld [vmem:[%s1 + $0x1c8] sm:$0xf]
  %v199 = vld [vmem:[%s1 + $0x1cc] sm:$0xf]
  %v200 = vld [vmem:[%s1 + $0x1d0] sm:$0xf]
  %v201 = vld [vmem:[%s1 + $0x1d4] sm:$0xf]
  %v202 = vld [vmem:[%s1 + $0x1d8] sm:$0xf]
  %v203 = vld [vmem:[%s1 + $0x1dc] sm:$0xf]
  %v204 = vld [vmem:[%s1 + $0x1e0] sm:$0xf]
  %v205 = vld [vmem:[%s1 + $0x1e4] sm:$0xf]
  %v206 = vld [vmem:[%s1 + $0x1e8] sm:$0xf]
  %v207 = vld [vmem:[%s1 + $0x1ec] sm:$0xf]
  %v208 = vld [vmem:[%s1 + $0x1f0] sm:$0xf]
  %v209 = vld [vmem:[%s1 + $0x1f4] sm:$0xf]
  %v210 = vld [vmem:[%s1 + $0x1f8] sm:$0xf]
  %v211 = vld [vmem:[%s1 + $0x1fc] sm:$0xf]
  %v212 = vld [vmem:[%s2] sm:$0x1]
  %v214 = vperm.slane %v212, 0
  %v344 = vunpack.c.l.b16 %v84
  %v345 = vunpack.c.l.b16 %v85
  %v346 = vunpack.c.l.b16 %v86
  %v347 = vunpack.c.l.b16 %v87
  %v348 = vunpack.c.l.b16 %v88
  %v349 = vunpack.c.l.b16 %v89
  %v350 = vunpack.c.l.b16 %v90
  %v351 = vunpack.c.l.b16 %v91
  %v352 = vunpack.c.l.b16 %v92
  %v353 = vunpack.c.l.b16 %v93
  %v354 = vunpack.c.l.b16 %v94
  %v355 = vunpack.c.l.b16 %v95
  %v356 = vunpack.c.l.b16 %v96
  %v357 = vunpack.c.l.b16 %v97
  %v358 = vunpack.c.l.b16 %v98
  %v359 = vunpack.c.l.b16 %v99
  %v360 = vunpack.c.l.b16 %v100
  %v361 = vunpack.c.l.b16 %v101
  %v362 = vunpack.c.l.b16 %v102
  %v363 = vunpack.c.l.b16 %v103
  %v364 = vunpack.c.l.b16 %v104
  %v365 = vunpack.c.l.b16 %v105
  %v366 = vunpack.c.l.b16 %v106
  %v367 = vunpack.c.l.b16 %v107
  %v368 = vunpack.c.l.b16 %v108
  %v369 = vunpack.c.l.b16 %v109
  %v370 = vunpack.c.l.b16 %v110
  %v371 = vunpack.c.l.b16 %v111
  %v372 = vunpack.c.l.b16 %v112
  %v373 = vunpack.c.l.b16 %v113
  %v374 = vunpack.c.l.b16 %v114
  %v375 = vunpack.c.l.b16 %v115
  %v376 = vunpack.c.l.b16 %v116
  %v377 = vunpack.c.l.b16 %v117
  %v378 = vunpack.c.l.b16 %v118
  %v379 = vunpack.c.l.b16 %v119
  %v380 = vunpack.c.l.b16 %v120
  %v381 = vunpack.c.l.b16 %v121
  %v382 = vunpack.c.l.b16 %v122
  %v383 = vunpack.c.l.b16 %v123
  %v384 = vunpack.c.l.b16 %v124
  %v385 = vunpack.c.l.b16 %v125
  %v386 = vunpack.c.l.b16 %v126
  %v387 = vunpack.c.l.b16 %v127
  %v388 = vunpack.c.l.b16 %v128
  %v389 = vunpack.c.l.b16 %v129
  %v390 = vunpack.c.l.b16 %v130
  %v391 = vunpack.c.l.b16 %v131
  %v392 = vunpack.c.l.b16 %v132
  %v393 = vunpack.c.l.b16 %v133
  %v394 = vunpack.c.l.b16 %v134
  %v395 = vunpack.c.l.b16 %v135
  %v396 = vunpack.c.l.b16 %v136
  %v397 = vunpack.c.l.b16 %v137
  %v398 = vunpack.c.l.b16 %v138
  %v399 = vunpack.c.l.b16 %v139
  %v400 = vunpack.c.l.b16 %v140
  %v401 = vunpack.c.l.b16 %v141
  %v402 = vunpack.c.l.b16 %v142
  %v403 = vunpack.c.l.b16 %v143
  %v404 = vunpack.c.l.b16 %v144
  %v405 = vunpack.c.l.b16 %v145
  %v406 = vunpack.c.l.b16 %v146
  %v407 = vunpack.c.l.b16 %v147
  %v408 = vunpack.c.l.b16 %v148
  %v409 = vunpack.c.l.b16 %v149
  %v410 = vunpack.c.l.b16 %v150
  %v411 = vunpack.c.l.b16 %v151
  %v412 = vunpack.c.l.b16 %v152
  %v413 = vunpack.c.l.b16 %v153
  %v414 = vunpack.c.l.b16 %v154
  %v415 = vunpack.c.l.b16 %v155
  %v416 = vunpack.c.l.b16 %v156
  %v417 = vunpack.c.l.b16 %v157
  %v418 = vunpack.c.l.b16 %v158
  %v419 = vunpack.c.l.b16 %v159
  %v420 = vunpack.c.l.b16 %v160
  %v421 = vunpack.c.l.b16 %v161
  %v422 = vunpack.c.l.b16 %v162
  %v423 = vunpack.c.l.b16 %v163
  %v424 = vunpack.c.l.b16 %v164
  %v425 = vunpack.c.l.b16 %v165
  %v426 = vunpack.c.l.b16 %v166
  %v427 = vunpack.c.l.b16 %v167
  %v428 = vunpack.c.l.b16 %v168
  %v429 = vunpack.c.l.b16 %v169
  %v430 = vunpack.c.l.b16 %v170
  %v431 = vunpack.c.l.b16 %v171
  %v432 = vunpack.c.l.b16 %v172
  %v433 = vunpack.c.l.b16 %v173
  %v434 = vunpack.c.l.b16 %v174
  %v435 = vunpack.c.l.b16 %v175
  %v436 = vunpack.c.l.b16 %v176
  %v437 = vunpack.c.l.b16 %v177
  %v438 = vunpack.c.l.b16 %v178
  %v439 = vunpack.c.l.b16 %v179
  %v440 = vunpack.c.l.b16 %v180
  %v441 = vunpack.c.l.b16 %v181
  %v442 = vunpack.c.l.b16 %v182
  %v443 = vunpack.c.l.b16 %v183
  %v444 = vunpack.c.l.b16 %v184
  %v445 = vunpack.c.l.b16 %v185
  %v446 = vunpack.c.l.b16 %v186
  %v447 = vunpack.c.l.b16 %v187
  %v448 = vunpack.c.l.b16 %v188
  %v449 = vunpack.c.l.b16 %v189
  %v450 = vunpack.c.l.b16 %v190
  %v451 = vunpack.c.l.b16 %v191
  %v452 = vunpack.c.l.b16 %v192
  %v453 = vunpack.c.l.b16 %v193
  %v454 = vunpack.c.l.b16 %v194
  %v455 = vunpack.c.l.b16 %v195
  %v456 = vunpack.c.l.b16 %v196
  %v457 = vunpack.c.l.b16 %v197
  %v458 = vunpack.c.l.b16 %v198
  %v459 = vunpack.c.l.b16 %v199
  %v460 = vunpack.c.l.b16 %v200
  %v461 = vunpack.c.l.b16 %v201
  %v462 = vunpack.c.l.b16 %v202
  %v463 = vunpack.c.l.b16 %v203
  %v464 = vunpack.c.l.b16 %v204
  %v465 = vunpack.c.l.b16 %v205
  %v466 = vunpack.c.l.b16 %v206
  %v467 = vunpack.c.l.b16 %v207
  %v468 = vunpack.c.l.b16 %v208
  %v469 = vunpack.c.l.b16 %v209
  %v470 = vunpack.c.l.b16 %v210
  %v471 = vunpack.c.l.b16 %v211
  %v472 = vpack.c.b16 %v345, %v344
  %v473 = vpack.c.b16 %v347, %v346
  %v474 = vpack.c.b16 %v349, %v348
  %v475 = vpack.c.b16 %v351, %v350
  %v476 = vpack.c.b16 %v353, %v352
  %v477 = vpack.c.b16 %v355, %v354
  %v478 = vpack.c.b16 %v357, %v356
  %v479 = vpack.c.b16 %v359, %v358
  %v480 = vpack.c.b16 %v361, %v360
  %v481 = vpack.c.b16 %v363, %v362
  %v482 = vpack.c.b16 %v365, %v364
  %v483 = vpack.c.b16 %v367, %v366
  %v484 = vpack.c.b16 %v369, %v368
  %v485 = vpack.c.b16 %v371, %v370
  %v486 = vpack.c.b16 %v373, %v372
  %v487 = vpack.c.b16 %v375, %v374
  %v488 = vpack.c.b16 %v377, %v376
  %v489 = vpack.c.b16 %v379, %v378
  %v490 = vpack.c.b16 %v381, %v380
  %v491 = vpack.c.b16 %v383, %v382
  %v492 = vpack.c.b16 %v385, %v384
  %v493 = vpack.c.b16 %v387, %v386
  %v494 = vpack.c.b16 %v389, %v388
  %v495 = vpack.c.b16 %v391, %v390
  %v496 = vpack.c.b16 %v393, %v392
  %v497 = vpack.c.b16 %v395, %v394
  %v498 = vpack.c.b16 %v397, %v396
  %v499 = vpack.c.b16 %v399, %v398
  %v500 = vpack.c.b16 %v401, %v400
  %v501 = vpack.c.b16 %v403, %v402
  %v502 = vpack.c.b16 %v405, %v404
  %v503 = vpack.c.b16 %v407, %v406
  %v504 = vpack.c.b16 %v409, %v408
  %v505 = vpack.c.b16 %v411, %v410
  %v506 = vpack.c.b16 %v413, %v412
  %v507 = vpack.c.b16 %v415, %v414
  %v508 = vpack.c.b16 %v417, %v416
  %v509 = vpack.c.b16 %v419, %v418
  %v510 = vpack.c.b16 %v421, %v420
  %v511 = vpack.c.b16 %v423, %v422
  %v512 = vpack.c.b16 %v425, %v424
  %v513 = vpack.c.b16 %v427, %v426
  %v514 = vpack.c.b16 %v429, %v428
  %v515 = vpack.c.b16 %v431, %v430
  %v516 = vpack.c.b16 %v433, %v432
  %v517 = vpack.c.b16 %v435, %v434
  %v518 = vpack.c.b16 %v437, %v436
  %v519 = vpack.c.b16 %v439, %v438
  %v520 = vpack.c.b16 %v441, %v440
  %v521 = vpack.c.b16 %v443, %v442
  %v522 = vpack.c.b16 %v445, %v444
  %v523 = vpack.c.b16 %v447, %v446
  %v524 = vpack.c.b16 %v449, %v448
  %v525 = vpack.c.b16 %v451, %v450
  %v526 = vpack.c.b16 %v453, %v452
  %v527 = vpack.c.b16 %v455, %v454
  %v528 = vpack.c.b16 %v457, %v456
  %v529 = vpack.c.b16 %v459, %v458
  %v530 = vpack.c.b16 %v461, %v460
  %v531 = vpack.c.b16 %v463, %v462
  %v532 = vpack.c.b16 %v465, %v464
  %v533 = vpack.c.b16 %v467, %v466
  %v534 = vpack.c.b16 %v469, %v468
  %v535 = vpack.c.b16 %v471, %v470
  %600 = vmatpush.bf16.msra.mxu0 %v479
  %601 = vmatpush.bf16.msra.mxu0 %v478
  %602 = vmatpush.bf16.msra.mxu0 %v477
  %603 = vmatpush.bf16.msra.mxu0 %v476
  %604 = vmatpush.bf16.msra.mxu0 %v475
  %605 = vmatpush.bf16.msra.mxu0 %v474
  %606 = vmatpush.bf16.msra.mxu0 %v473
  %607 = vmatpush.bf16.msra.mxu0 %v472
  %608 = vmatmul.bf16.gmra.mxu0 %v76
  %v609 = vpop.f32.mrf.mxu0
  %v610 = vadd.f32 %v214, %v609
  %v611 = vpop.f32.mrf.mxu0
  %612 = vdwg.mxu0
  %613 = vmatpush.bf16.msra.mxu0 %v487
  %614 = vmatpush.bf16.msra.mxu0 %v486
  %615 = vmatpush.bf16.msra.mxu0 %v485
  %616 = vmatpush.bf16.msra.mxu0 %v484
  %617 = vmatpush.bf16.msra.mxu0 %v483
  %618 = vmatpush.bf16.msra.mxu0 %v482
  %619 = vmatpush.bf16.msra.mxu0 %v481
  %620 = vmatpush.bf16.msra.mxu0 %v480
  %621 = vmatmul.bf16.gmra.mxu0 %v77
  %v622 = vpop.f32.mrf.mxu0
  %v623 = vadd.f32 %v610, %v622
  %v624 = vpop.f32.mrf.mxu0
  %625 = vdwg.mxu0
  %626 = vmatpush.bf16.msra.mxu0 %v495
  %627 = vmatpush.bf16.msra.mxu0 %v494
  %628 = vmatpush.bf16.msra.mxu0 %v493
  %629 = vmatpush.bf16.msra.mxu0 %v492
  %630 = vmatpush.bf16.msra.mxu0 %v491
  %631 = vmatpush.bf16.msra.mxu0 %v490
  %632 = vmatpush.bf16.msra.mxu0 %v489
  %633 = vmatpush.bf16.msra.mxu0 %v488
  %634 = vmatmul.bf16.gmra.mxu0 %v78
  %v635 = vpop.f32.mrf.mxu0
  %v636 = vadd.f32 %v623, %v635
  %v637 = vpop.f32.mrf.mxu0
  %638 = vdwg.mxu0
  %639 = vmatpush.bf16.msra.mxu0 %v503
  %640 = vmatpush.bf16.msra.mxu0 %v502
  %641 = vmatpush.bf16.msra.mxu0 %v501
  %642 = vmatpush.bf16.msra.mxu0 %v500
  %643 = vmatpush.bf16.msra.mxu0 %v499
  %644 = vmatpush.bf16.msra.mxu0 %v498
  %645 = vmatpush.bf16.msra.mxu0 %v497
  %646 = vmatpush.bf16.msra.mxu0 %v496
  %647 = vmatmul.bf16.gmra.mxu0 %v79
  %v648 = vpop.f32.mrf.mxu0
  %v649 = vadd.f32 %v636, %v648
  %v650 = vpop.f32.mrf.mxu0
  %651 = vdwg.mxu0
  %652 = vmatpush.bf16.msra.mxu0 %v511
  %653 = vmatpush.bf16.msra.mxu0 %v510
  %654 = vmatpush.bf16.msra.mxu0 %v509
  %655 = vmatpush.bf16.msra.mxu0 %v508
  %656 = vmatpush.bf16.msra.mxu0 %v507
  %657 = vmatpush.bf16.msra.mxu0 %v506
  %658 = vmatpush.bf16.msra.mxu0 %v505
  %659 = vmatpush.bf16.msra.mxu0 %v504
  %660 = vmatmul.bf16.gmra.mxu0 %v80
  %v661 = vpop.f32.mrf.mxu0
  %v662 = vadd.f32 %v649, %v661
  %v663 = vpop.f32.mrf.mxu0
  %664 = vdwg.mxu0
  %665 = vmatpush.bf16.msra.mxu0 %v519
  %666 = vmatpush.bf16.msra.mxu0 %v518
  %667 = vmatpush.bf16.msra.mxu0 %v517
  %668 = vmatpush.bf16.msra.mxu0 %v516
  %669 = vmatpush.bf16.msra.mxu0 %v515
  %670 = vmatpush.bf16.msra.mxu0 %v514
  %671 = vmatpush.bf16.msra.mxu0 %v513
  %672 = vmatpush.bf16.msra.mxu0 %v512
  %673 = vmatmul.bf16.gmra.mxu0 %v81
  %v674 = vpop.f32.mrf.mxu0
  %v675 = vadd.f32 %v662, %v674
  %v676 = vpop.f32.mrf.mxu0
  %677 = vdwg.mxu0
  %678 = vmatpush.bf16.msra.mxu0 %v527
  %679 = vmatpush.bf16.msra.mxu0 %v526
  %680 = vmatpush.bf16.msra.mxu0 %v525
  %681 = vmatpush.bf16.msra.mxu0 %v524
  %682 = vmatpush.bf16.msra.mxu0 %v523
  %683 = vmatpush.bf16.msra.mxu0 %v522
  %684 = vmatpush.bf16.msra.mxu0 %v521
  %685 = vmatpush.bf16.msra.mxu0 %v520
  %686 = vmatmul.bf16.gmra.mxu0 %v82
  %v687 = vpop.f32.mrf.mxu0
  %v688 = vadd.f32 %v675, %v687
  %v689 = vpop.f32.mrf.mxu0
  %690 = vdwg.mxu0
  %691 = vmatpush.bf16.msra.mxu0 %v535
  %692 = vmatpush.bf16.msra.mxu0 %v534
  %693 = vmatpush.bf16.msra.mxu0 %v533
  %694 = vmatpush.bf16.msra.mxu0 %v532
  %695 = vmatpush.bf16.msra.mxu0 %v531
  %696 = vmatpush.bf16.msra.mxu0 %v530
  %697 = vmatpush.bf16.msra.mxu0 %v529
  %698 = vmatpush.bf16.msra.mxu0 %v528
  %699 = vmatmul.bf16.gmra.mxu0 %v83
  %v700 = vpop.f32.mrf.mxu0
  %v701 = vadd.f32 %v688, %v700
  %v702 = vpop.f32.mrf.mxu0
  %703 = vdwg.mxu0
  %v704 = vmax.f32 %v701, 0.0
  %v705 = vpack.c.bf16 %v704, %v704
  %v706 = vld [vmem:[%s3] sm:$0xf]
  %v707 = vld [vmem:[%s3 + $0x4] sm:$0xf]
  %v708 = vld [vmem:[%s3 + $0x8] sm:$0xf]
  %v709 = vld [vmem:[%s3 + $0xc] sm:$0xf]
  %v710 = vld [vmem:[%s4] sm:$0x1]
  %v712 = vperm.slane %v710, 0
  %v718 = vunpack.c.l.b16 %v706
  %v719 = vunpack.c.l.b16 %v707
  %v720 = vunpack.c.l.b16 %v708
  %v721 = vunpack.c.l.b16 %v709
  %v722 = vpack.c.b16 %v719, %v718
  %v723 = vpack.c.b16 %v721, %v720
  %vm726 = vcmask 261120
  %v728 = vsel %vm726, %v705, 0
  %730 = vmatpush.bf16.msra.mxu0 0
  %731 = vmatpush.bf16.msra.mxu0 0
  %732 = vmatpush.bf16.msra.mxu0 0
  %733 = vmatpush.bf16.msra.mxu0 0
  %734 = vmatpush.bf16.msra.mxu0 0
  %735 = vmatpush.bf16.msra.mxu0 0
  %736 = vmatpush.bf16.msra.mxu0 %v723
  %737 = vmatpush.bf16.msra.mxu0 %v722
  %738 = vmatmul.bf16.gmra.mxu0 %v728
  %v739 = vpop.f32.mrf.mxu0
  %v740 = vadd.f32 %v712, %v739
  %v741 = vpop.f32.mrf.mxu0
  %742 = vdwg.mxu0
  %v743 = vmax.f32 %v740, 0.0
  %v744 = vld [vmem:[%s5] sm:$0x1]
  %v745 = vpack.c.bf16 %v743, %v743
  %v746 = vld [vmem:[#allocation2] sm:$0x1]
  %748 = vset.pattern.permute.xlu0 0
  %749 = vperm.xlu0 %748, %v746
  %v750 = vpop.permute.xlu0 %749
  %v752 = vperm.slane %v750, 0
  %vm753 = vcmask 130048
  %v755 = vsel %vm753, %v744, 0
  %v758 = vsel %vm753, %v745, 0
  %760 = vmatpush.bf16.xpose.msra.mxu0 0
  %761 = vmatpush.bf16.xpose.msra.mxu0 0
  %762 = vmatpush.bf16.xpose.msra.mxu0 0
  %763 = vmatpush.bf16.xpose.msra.mxu0 0
  %764 = vmatpush.bf16.xpose.msra.mxu0 0
  %765 = vmatpush.bf16.xpose.msra.mxu0 0
  %766 = vmatpush.bf16.xpose.msra.mxu0 0
  %767 = vmatpush.bf16.xpose.msra.mxu0 %v758
  %768 = vmatmul.bf16.gmra.mxu0 %v755
  %v769 = vpop.f32.mrf.mxu0
  %v770 = vadd.f32 %v752, %v769
  %v771 = vpop.f32.mrf.mxu0
  %772 = vdwg.mxu0
  %vm773 = vcmask 57344
  %774 = vst.msk [vmem:[%s7] sm:$0x1] %vm773, %v770
  // Predicated region
  $region30: #{perceptron_forward.1} parent=0 // pred_check
    _
  $region31: #{perceptron_forward.1} parent=0 // pred_check_branch
    %776 = sbr.rel (0) target = $region33
  $region32: #{perceptron_forward.1} parent=0 // pred_region
    _
  $region33: #{perceptron_forward.1} parent=0 // pred_fallthru
    _
  // Predicated region
  $region34: #{perceptron_forward.1} parent=0 // pred_check
    _
  $region35: #{perceptron_forward.1} parent=0 // pred_check_branch
    %778 = sbr.rel (0) target = $region37
  $region36: #{perceptron_forward.1} parent=0 // pred_region
    _
  $region37: #{perceptron_forward.1} parent=0 // pred_fallthru
    _

</llo_original>
